<compile_context>
chip_gen: v7x
topology: tpu7x:2x2x1
jax: 0.10.0
libtpu: 0.0.40
codegen_flags: <defaults>
</compile_context>

<pallas_src>
import functools
import math

import jax
import jax.numpy as jnp
import numpy as np
from jax.experimental import pallas as pl
from jax.experimental.pallas import tpu as pltpu


def _round_up(x, m):
    return (x + m - 1) // m * m


def wmf_partial_kernel(u_ref, p_ref, n_ref, out_ref, *, batch_size):
    """One batch tile: (TB, Dp) x3 -> partial (sum_sq, sum_bce_pos, sum_bce_neg)."""
    tile_b = u_ref.shape[0]

    u = u_ref[...]          # (TB, Dp) f32; padded rows/lanes are zero
    p = p_ref[...]
    n = n_ref[...]

    # L2 regularizer numerator (zero padding contributes nothing).
    sum_sq = jnp.sum(u * u + p * p + n * n)

    # Per-example scores for the whole batch tile at once.
    # TODO(synk): for very large D this lane reduce could be moved onto the MXU
    # via a (D_pad, 1) ones matmul; at D_pad=128 the XLU reduce is not binding.
    pos_s = jnp.sum(u * p, axis=-1, keepdims=True)   # (TB, 1)
    neg_s = jnp.sum(u * n, axis=-1, keepdims=True)   # (TB, 1)

    # BCE via numerically safe softplus:
    #   -log(sigmoid(s))   = softplus(-s)
    #   -log(1-sigmoid(s)) = softplus(s)
    def softplus(x):
        return jnp.maximum(x, 0.0) + jnp.log(1.0 + jnp.exp(-jnp.abs(x)))

    # Mask rows that are batch padding (their scores are 0 -> softplus(0) != 0).
    row = (pl.program_id(0) * tile_b
           + jax.lax.broadcasted_iota(jnp.int32, (tile_b, 1), 0))
    valid = (row < batch_size).astype(jnp.float32)    # (TB, 1)

    sum_bce_pos = jnp.sum(valid * softplus(-pos_s))
    sum_bce_neg = jnp.sum(valid * softplus(neg_s))

    # Write the three partial sums into lanes 0..2 of sublane 0 of this tile's
    # (1, 8, 128) output block (rest zeros); the wrapper sums over tiles.
    sub = jax.lax.broadcasted_iota(jnp.int32, (1, 8, 128), 1)
    lane = jax.lax.broadcasted_iota(jnp.int32, (1, 8, 128), 2)
    first = sub == 0
    out_ref[...] = (jnp.where(first & (lane == 0), sum_sq, 0.0)
                    + jnp.where(first & (lane == 1), sum_bce_pos, 0.0)
                    + jnp.where(first & (lane == 2), sum_bce_neg, 0.0))


def wmf_loss(users, positive_items, negative_items,
             user_embedding, item_embedding, weight_decay):
    """Pallas implementation of WMF.forward -> scalar loss."""
    users = users.astype(jnp.int32)
    positive_items = positive_items.astype(jnp.int32)
    negative_items = negative_items.astype(jnp.int32)
    user_embedding = user_embedding.astype(jnp.float32)
    item_embedding = item_embedding.astype(jnp.float32)

    b = int(users.shape[0])
    d = int(user_embedding.shape[1])

    # Pre-gather only the 3*B rows the loss needs (tables stay in HBM).
    u = user_embedding[users]            # (B, D)
    p = item_embedding[positive_items]   # (B, D)
    n = item_embedding[negative_items]   # (B, D)

    d_pad = _round_up(d, 128)            # lane-dense tiles
    tile_b = min(256, _round_up(b, 8))   # batch tile, multiple of 8 sublanes
    b_pad = _round_up(b, tile_b)
    num_tiles = b_pad // tile_b

    def pad(x):
        return jnp.pad(x, ((0, b_pad - b), (0, d_pad - d)))

    u, p, n = pad(u), pad(p), pad(n)

    kernel = functools.partial(wmf_partial_kernel, batch_size=b)
    block = pl.BlockSpec((tile_b, d_pad), lambda i: (i, 0))

    partials = pl.pallas_call(
        kernel,
        out_shape=jax.ShapeDtypeStruct((num_tiles, 8, 128), jnp.float32),
        grid_spec=pltpu.PrefetchScalarGridSpec(
            num_scalar_prefetch=0,
            grid=(num_tiles,),
            in_specs=[block, block, block],
            out_specs=pl.BlockSpec((1, 8, 128), lambda i: (i, 0, 0)),
        ),
        compiler_params=pltpu.CompilerParams(
            dimension_semantics=("parallel",)),
    )(u, p, n)

    # Trivial scalar combine (glue): sum per-tile partials, apply 1/B scaling
    # and weight decay exactly as the PyTorch forward does.
    totals = jnp.sum(partials, axis=(0, 1))          # (128,)
    sum_sq, sum_bce_pos, sum_bce_neg = totals[0], totals[1], totals[2]

    inv_b = 1.0 / float(b)
    regular_loss = 0.5 * sum_sq * inv_b
    bce_loss = 0.5 * (sum_bce_pos * inv_b + sum_bce_neg * inv_b)
    return bce_loss + float(weight_decay) * regular_loss


def wmf_loss_ref(users, positive_items, negative_items,
                 user_embedding, item_embedding, weight_decay):
    """Pure-JAX reference mirroring the PyTorch forward exactly."""
    u = user_embedding[users]
    p = item_embedding[positive_items]
    n = item_embedding[negative_items]
    b = users.shape[0]
    regular_loss = 0.5 * (jnp.sum(u * u) + jnp.sum(p * p) + jnp.sum(n * n)) / b
    pos_rating = jax.nn.sigmoid(jnp.sum(u * p, axis=-1))
    neg_rating = jax.nn.sigmoid(jnp.sum(u * n, axis=-1))
    bce_pos = jnp.mean(-jnp.log(pos_rating))
    bce_neg = jnp.mean(-jnp.log(1.0 - neg_rating))
    return (bce_pos + bce_neg) / 2.0 + weight_decay * regular_loss


if __name__ == "__main__":
    # Small synthetic "dataset" consistent with the module's __init__.
    num_users, num_items, embedding_dim, batch = 64, 96, 32, 8
    weight_decay = 1e-4

    key = jax.random.PRNGKey(0)
    k1, k2, k3, k4, k5 = jax.random.split(key, 5)

    # init_weight(): uniform(-stdv, stdv), stdv = 1/sqrt(embedding_dim)
    stdv = 1.0 / math.sqrt(embedding_dim)
    user_embedding = jax.random.uniform(
        k1, (num_users, embedding_dim), jnp.float32, -stdv, stdv)
    item_embedding = jax.random.uniform(
        k2, (num_items, embedding_dim), jnp.float32, -stdv, stdv)

    users = jax.random.randint(k3, (batch,), 0, num_users, jnp.int32)
    positive_items = jax.random.randint(k4, (batch,), 0, num_items, jnp.int32)
    negative_items = jax.random.randint(k5, (batch,), 0, num_items, jnp.int32)

    loss = wmf_loss(users, positive_items, negative_items,
                    user_embedding, item_embedding, weight_decay)
    loss = jax.block_until_ready(loss)

    ref = wmf_loss_ref(users, positive_items, negative_items,
                       user_embedding, item_embedding, weight_decay)
    np.testing.assert_allclose(np.asarray(loss), np.asarray(ref),
                               rtol=1e-5, atol=1e-6)
    print("KERNEL_OK")
</pallas_src>

<mosaic_0001>
module attributes {stable_mosaic.version = 11 : i64} {
  func.func @wmf_partial_kernel(%arg0: i32, %arg1: memref<8x128xf32, #tpu.memory_space<vmem>>, %arg2: memref<8x128xf32, #tpu.memory_space<vmem>>, %arg3: memref<8x128xf32, #tpu.memory_space<vmem>>, %arg4: memref<1x8x128xf32, #tpu.memory_space<vmem>>) attributes {dimension_semantics = [#tpu.dimension_semantics<parallel>], iteration_bounds = array<i64: 1>, scalar_prefetch = 0 : i64, scratch_operands = 0 : i64, tpu.core_type = #tpu.core_type<tc>, window_params = [{transform_indices = @transform_0, window_bounds = array<i64: 8, 128>}, {transform_indices = @transform_1, window_bounds = array<i64: 8, 128>}, {transform_indices = @transform_2, window_bounds = array<i64: 8, 128>}, {transform_indices = @transform_3, window_bounds = array<i64: 1, 8, 128>}]} {
    %c0 = arith.constant 0 : index
    %c0_0 = arith.constant 0 : index
    %0 = vector.load %arg1[%c0, %c0_0] : memref<8x128xf32, #tpu.memory_space<vmem>>, vector<8x128xf32>
    %c0_1 = arith.constant 0 : index
    %c0_2 = arith.constant 0 : index
    %1 = vector.load %arg2[%c0_1, %c0_2] : memref<8x128xf32, #tpu.memory_space<vmem>>, vector<8x128xf32>
    %c0_3 = arith.constant 0 : index
    %c0_4 = arith.constant 0 : index
    %2 = vector.load %arg3[%c0_3, %c0_4] : memref<8x128xf32, #tpu.memory_space<vmem>>, vector<8x128xf32>
    %3 = arith.mulf %0, %0 : vector<8x128xf32>
    %4 = arith.mulf %1, %1 : vector<8x128xf32>
    %5 = arith.addf %3, %4 : vector<8x128xf32>
    %6 = arith.mulf %2, %2 : vector<8x128xf32>
    %7 = arith.addf %5, %6 : vector<8x128xf32>
    %8 = vector.shape_cast %7 : vector<8x128xf32> to vector<1x8x128xf32>
    %cst = arith.constant dense<0.000000e+00> : vector<1xf32>
    %9 = vector.multi_reduction <add>, %8, %cst [1, 2] : vector<1x8x128xf32> to vector<1xf32>
    %10 = vector.shape_cast %9 : vector<1xf32> to vector<1x1x1xf32>
    %11 = vector.extract %10[0, 0, 0] : f32 from vector<1x1x1xf32>
    %12 = arith.mulf %0, %1 : vector<8x128xf32>
    %cst_5 = arith.constant dense<0.000000e+00> : vector<8xf32>
    %13 = vector.multi_reduction <add>, %12, %cst_5 [1] : vector<8x128xf32> to vector<8xf32>
    %14 = vector.shape_cast %13 : vector<8xf32> to vector<8x1xf32>
    %15 = arith.mulf %0, %2 : vector<8x128xf32>
    %cst_6 = arith.constant dense<0.000000e+00> : vector<8xf32>
    %16 = vector.multi_reduction <add>, %15, %cst_6 [1] : vector<8x128xf32> to vector<8xf32>
    %17 = vector.shape_cast %16 : vector<8xf32> to vector<8x1xf32>
    %c8_i32 = arith.constant 8 : i32
    %18 = arith.muli %arg0, %c8_i32 : i32
    %19 = tpu.iota {dimensions = array<i32: 0>} : vector<8x1xi32>
    %20 = vector.broadcast %18 : i32 to vector<8x1xi32>
    %21 = arith.addi %20, %19 : vector<8x1xi32>
    %c8_i32_7 = arith.constant 8 : i32
    %22 = vector.broadcast %c8_i32_7 : i32 to vector<8x1xi32>
    %23 = arith.cmpi slt, %21, %22 : vector<8x1xi32>
    %24 = arith.extui %23 : vector<8x1xi1> to vector<8x1xi32>
    %25 = arith.sitofp %24 : vector<8x1xi32> to vector<8x1xf32>
    %cst_8 = arith.constant 0.000000e+00 : f32
    %26 = vector.broadcast %cst_8 : f32 to vector<8x1xf32>
    %27 = arith.subf %26, %14 : vector<8x1xf32>
    %cst_9 = arith.constant 0.000000e+00 : f32
    %28 = vector.broadcast %cst_9 : f32 to vector<8x1xf32>
    %29 = arith.maximumf %27, %28 : vector<8x1xf32>
    %30 = math.absf %27 : vector<8x1xf32>
    %cst_10 = arith.constant 0.000000e+00 : f32
    %31 = vector.broadcast %cst_10 : f32 to vector<8x1xf32>
    %32 = arith.subf %31, %30 : vector<8x1xf32>
    %33 = math.exp %32 : vector<8x1xf32>
    %cst_11 = arith.constant 1.000000e+00 : f32
    %34 = vector.broadcast %cst_11 : f32 to vector<8x1xf32>
    %35 = arith.addf %34, %33 : vector<8x1xf32>
    %36 = math.log %35 : vector<8x1xf32>
    %37 = arith.addf %29, %36 : vector<8x1xf32>
    %38 = arith.mulf %25, %37 : vector<8x1xf32>
    %39 = vector.shape_cast %38 : vector<8x1xf32> to vector<1x8x1xf32>
    %cst_12 = arith.constant dense<0.000000e+00> : vector<1xf32>
    %40 = vector.multi_reduction <add>, %39, %cst_12 [1, 2] : vector<1x8x1xf32> to vector<1xf32>
    %41 = vector.shape_cast %40 : vector<1xf32> to vector<1x1x1xf32>
    %42 = vector.extract %41[0, 0, 0] : f32 from vector<1x1x1xf32>
    %cst_13 = arith.constant 0.000000e+00 : f32
    %43 = vector.broadcast %cst_13 : f32 to vector<8x1xf32>
    %44 = arith.maximumf %17, %43 : vector<8x1xf32>
    %45 = math.absf %17 : vector<8x1xf32>
    %cst_14 = arith.constant 0.000000e+00 : f32
    %46 = vector.broadcast %cst_14 : f32 to vector<8x1xf32>
    %47 = arith.subf %46, %45 : vector<8x1xf32>
    %48 = math.exp %47 : vector<8x1xf32>
    %cst_15 = arith.constant 1.000000e+00 : f32
    %49 = vector.broadcast %cst_15 : f32 to vector<8x1xf32>
    %50 = arith.addf %49, %48 : vector<8x1xf32>
    %51 = math.log %50 : vector<8x1xf32>
    %52 = arith.addf %44, %51 : vector<8x1xf32>
    %53 = arith.mulf %25, %52 : vector<8x1xf32>
    %54 = vector.shape_cast %53 : vector<8x1xf32> to vector<1x8x1xf32>
    %cst_16 = arith.constant dense<0.000000e+00> : vector<1xf32>
    %55 = vector.multi_reduction <add>, %54, %cst_16 [1, 2] : vector<1x8x1xf32> to vector<1xf32>
    %56 = vector.shape_cast %55 : vector<1xf32> to vector<1x1x1xf32>
    %57 = vector.extract %56[0, 0, 0] : f32 from vector<1x1x1xf32>
    %58 = tpu.iota {dimensions = array<i32: 1>} : vector<1x8x128xi32>
    %59 = tpu.iota {dimensions = array<i32: 2>} : vector<1x8x128xi32>
    %c0_i32 = arith.constant 0 : i32
    %60 = vector.broadcast %c0_i32 : i32 to vector<1x8x128xi32>
    %61 = arith.cmpi eq, %58, %60 : vector<1x8x128xi32>
    %c0_i32_17 = arith.constant 0 : i32
    %62 = vector.broadcast %c0_i32_17 : i32 to vector<1x8x128xi32>
    %63 = arith.cmpi eq, %59, %62 : vector<1x8x128xi32>
    %64 = arith.andi %61, %63 : vector<1x8x128xi1>
    %cst_18 = arith.constant 0.000000e+00 : f32
    %65 = vector.broadcast %11 : f32 to vector<1x8x128xf32>
    %66 = vector.broadcast %cst_18 : f32 to vector<1x8x128xf32>
    %67 = arith.select %64, %65, %66 : vector<1x8x128xi1>, vector<1x8x128xf32>
    %c1_i32 = arith.constant 1 : i32
    %68 = vector.broadcast %c1_i32 : i32 to vector<1x8x128xi32>
    %69 = arith.cmpi eq, %59, %68 : vector<1x8x128xi32>
    %70 = arith.andi %61, %69 : vector<1x8x128xi1>
    %cst_19 = arith.constant 0.000000e+00 : f32
    %71 = vector.broadcast %42 : f32 to vector<1x8x128xf32>
    %72 = vector.broadcast %cst_19 : f32 to vector<1x8x128xf32>
    %73 = arith.select %70, %71, %72 : vector<1x8x128xi1>, vector<1x8x128xf32>
    %74 = arith.addf %67, %73 : vector<1x8x128xf32>
    %c2_i32 = arith.constant 2 : i32
    %75 = vector.broadcast %c2_i32 : i32 to vector<1x8x128xi32>
    %76 = arith.cmpi eq, %59, %75 : vector<1x8x128xi32>
    %77 = arith.andi %61, %76 : vector<1x8x128xi1>
    %cst_20 = arith.constant 0.000000e+00 : f32
    %78 = vector.broadcast %57 : f32 to vector<1x8x128xf32>
    %79 = vector.broadcast %cst_20 : f32 to vector<1x8x128xf32>
    %80 = arith.select %77, %78, %79 : vector<1x8x128xi1>, vector<1x8x128xf32>
    %81 = arith.addf %74, %80 : vector<1x8x128xf32>
    %c0_21 = arith.constant 0 : index
    %c0_22 = arith.constant 0 : index
    %c0_23 = arith.constant 0 : index
    %82 = vector.load %arg4[%c0_21, %c0_22, %c0_23] : memref<1x8x128xf32, #tpu.memory_space<vmem>>, vector<1x8x128xf32>
    tpu.vector_store %arg4[%c0_21, %c0_22, %c0_23], %81 {strides = array<i32>} : memref<1x8x128xf32, #tpu.memory_space<vmem>>, vector<1x8x128xf32>,
    return
  }
  func.func @transform_0(%arg0: i32) -> (i32, i32) {
    %c0_i32 = arith.constant 0 : i32
    %c0_i32_0 = arith.constant 0 : i32
    return %arg0, %c0_i32 : i32, i32
  }
  func.func @transform_1(%arg0: i32) -> (i32, i32) {
    %c0_i32 = arith.constant 0 : i32
    %c0_i32_0 = arith.constant 0 : i32
    return %arg0, %c0_i32 : i32, i32
  }
  func.func @transform_2(%arg0: i32) -> (i32, i32) {
    %c0_i32 = arith.constant 0 : i32
    %c0_i32_0 = arith.constant 0 : i32
    return %arg0, %c0_i32 : i32, i32
  }
  func.func @transform_3(%arg0: i32) -> (i32, i32, i32) {
    %c0_i32 = arith.constant 0 : i32
    %c0_i32_0 = arith.constant 0 : i32
    %c0_i32_1 = arith.constant 0 : i32
    return %arg0, %c0_i32, %c0_i32_0 : i32, i32, i32
  }
}

</mosaic_0001>

<llo_original>
// kernel: tpu_custom_call.1
$region0: #{tpu_custom_call.1}
  #allocation0 [shape = 'u32[]', space=smem, size = 0x4, offset = 0x4, fixed_abs, tag = 'smem constant byte address 0x4 - core index']
  #allocation1 [shape = 'u32[144,128]{1,0:T(1,128)}', space=vmem, size = 0x12000, scoped, tag = 'internal scratch']
  %s0 = inlined_call_operand.hbm [shape: f32[8,128], index: 0, kind: input, shape index: {}]
  %s1 = inlined_call_operand.hbm [shape: f32[8,128], index: 1, kind: input, shape index: {}]
  %s2 = inlined_call_operand.hbm [shape: f32[8,128], index: 2, kind: input, shape index: {}]
  %s3 = inlined_call_operand.hbm [shape: f32[1,8,128], index: 3, kind: output, shape index: {}]
  %s4 = sld [smem:[#allocation0]]
  $region34: #{tpu_custom_call.1} parent=0
    _
  %s6 = ssub.s32 1, %s4
  %s7 = scalar_select 0, %s6, %s4
  $region1: #{tpu_custom_call.1} parent=0
    #allocation2 [shape = 'u8[4096]{0}', space=vmem, size = 0x1000, scoped, tag = 'input window, operand 0, single buffered']
    #allocation3 [shape = 's32[1]{0}', space=sflag, size = 0x4, scoped, tag = 'scoped memory for tpu_custom_call.1']
    #allocation4 [shape = 's32[1]{0}', space=sflag, size = 0x4, scoped, tag = 'scoped memory for tpu_custom_call.1']
    #allocation5 [shape = 'u8[4096]{0}', space=vmem, size = 0x1000, scoped, tag = 'input window, operand 1, single buffered']
    #allocation6 [shape = 's32[1]{0}', space=sflag, size = 0x4, scoped, tag = 'scoped memory for tpu_custom_call.1']
    #allocation7 [shape = 'u8[4096]{0}', space=vmem, size = 0x1000, scoped, tag = 'input window, operand 2, single buffered']
    #allocation8 [shape = 'u8[4096]{0}', space=vmem, size = 0x1000, scoped, tag = 'output window, operand 0, single buffered']
    %8 = vsyncpa [#allocation3], 0
    %9 = vsyncpa [#allocation6], 0
    %10 = vsyncpa [#allocation4], 0
    // Predicated region
    $region2: #{tpu_custom_call.1} parent=1 // pred_check
      _
    $region3: #{tpu_custom_call.1} parent=1 // pred_check_branch
      %12 = sbr.rel (0) target = $region5
    $region4: #{tpu_custom_call.1} parent=1 // pred_region
      %s14 = ssub.s32 128, 128
      %15 = vsyncadd [#allocation3], %s14
      %s17 = sshll.u32 [#allocation2], 4
      %s18 = int_to_ptr.vmem [resolvable:$true] %s17
      %20 = dma.hbm_to_vmem [thread:$0]  %s0, 128, %s18, [#allocation3]
    $region5: #{tpu_custom_call.1} parent=1 // pred_fallthru
      _
    // Predicated region
    $region6: #{tpu_custom_call.1} parent=1 // pred_check
      _
    $region7: #{tpu_custom_call.1} parent=1 // pred_check_branch
      %22 = sbr.rel (0) target = $region9
    $region8: #{tpu_custom_call.1} parent=1 // pred_region
      %s24 = ssub.s32 128, 128
      %25 = vsyncadd [#allocation6], %s24
      %s27 = sshll.u32 [#allocation5], 4
      %s28 = int_to_ptr.vmem [resolvable:$true] %s27
      %30 = dma.hbm_to_vmem [thread:$0]  %s1, 128, %s28, [#allocation6]
    $region9: #{tpu_custom_call.1} parent=1 // pred_fallthru
      _
    // Predicated region
    $region10: #{tpu_custom_call.1} parent=1 // pred_check
      _
    $region11: #{tpu_custom_call.1} parent=1 // pred_check_branch
      %32 = sbr.rel (0) target = $region13
    $region12: #{tpu_custom_call.1} parent=1 // pred_region
      %s34 = ssub.s32 128, 128
      %35 = vsyncadd [#allocation6], %s34
      %s37 = sshll.u32 [#allocation7], 4
      %s38 = int_to_ptr.vmem [resolvable:$true] %s37
      %40 = dma.hbm_to_vmem [thread:$0]  %s2, 128, %s38, [#allocation6]
    $region13: #{tpu_custom_call.1} parent=1 // pred_fallthru
      _
    // Predicated region
    $region14: #{tpu_custom_call.1} parent=1 // pred_check
      _
    $region15: #{tpu_custom_call.1} parent=1 // pred_check_branch
      %42 = sbr.rel (0) target = $region17
    $region16: #{tpu_custom_call.1} parent=1 // pred_region
      %43 = dma.done [#allocation3], 128
    $region17: #{tpu_custom_call.1} parent=1 // pred_fallthru
      _
    // Predicated region
    $region18: #{tpu_custom_call.1} parent=1 // pred_check
      _
    $region19: #{tpu_custom_call.1} parent=1 // pred_check_branch
      %45 = sbr.rel (0) target = $region21
    $region20: #{tpu_custom_call.1} parent=1 // pred_region
      %46 = dma.done [#allocation6], 128
    $region21: #{tpu_custom_call.1} parent=1 // pred_fallthru
      _
    // Predicated region
    $region22: #{tpu_custom_call.1} parent=1 // pred_check
      _
    $region23: #{tpu_custom_call.1} parent=1 // pred_check_branch
      %48 = sbr.rel (0) target = $region25
    $region24: #{tpu_custom_call.1} parent=1 // pred_region
      %49 = dma.done [#allocation6], 128
    $region25: #{tpu_custom_call.1} parent=1 // pred_fallthru
      _
    %v50 = vld [vmem:[#allocation2] sm:$0xff]
    %v51 = vld [vmem:[#allocation5] sm:$0xff]
    %v52 = vld [vmem:[#allocation7] sm:$0xff]
    %v53 = vmul.f32 %v50, %v50
    %v54 = vmul.f32 %v51, %v51
    %v55 = vadd.f32 %v53, %v54
    %v56 = vmul.f32 %v52, %v52
    %v57 = vadd.f32 %v55, %v56
    %58 = vadd.xlane.f32.xlu0 %v57
    %v59 = vpop.xlane.xlu0 %58
    %v60 = vrot.slane %v59, 4
    %v61 = vadd.f32 %v59, %v60
    %v62 = vrot.slane %v61, 2
    %v63 = vadd.f32 %v61, %v62
    %v64 = vrot.slane %v63, 1
    %v65 = vadd.f32 %v63, %v64
    %s66 = vtos %v65
    %v67 = vmul.f32 %v50, %v51
    %68 = vadd.xlane.f32.xlu0 %v67
    %v69 = vpop.xlane.xlu0 %68
    %v70 = vmul.f32 %v50, %v52
    %71 = vadd.xlane.f32.xlu0 %v70
    %v72 = vpop.xlane.xlu0 %71
    %s73 = smul.u32 0, 8
    %v74 = vlaneseq
    %v75 = vshrl.u32 %v74, 7
    %v76 = vstv %s73
    %v77 = vadd.s32 %v76, %v75
    %vm78 = vcmp.lt.s32.totalorder %v77, 8
    %v79 = vsel %vm78, 1, 0
    %v80 = vcvt.s32.f32 %v79
    %v81 = vsub.f32 0.0, %v69
    %v82 = vmax.f32 %v81, 0.0
    %v83 = vand.u32 2147483647, %v81
    %v84 = vsub.f32 0.0, %v83
    %v85 = vmul.f32 %v84, 1.442695
    %v86 = vpow.pop %v85
    %v87 = vadd.f32 %v86, 1.0
    %v88 = vlog2.pop %v87
    %v89 = vmul.f32 %v88, 0.6931472
    %v90 = vadd.f32 %v82, %v89
    %v91 = vmul.f32 %v80, %v90
    %vm92 = vcmask 7168
    %v93 = vsel %vm92, %v91, 0.0
    %94 = vadd.xlane.f32.xlu0 %v93
    %v95 = vpop.xlane.xlu0 %94
    %v96 = vrot.slane %v95, 4
    %v97 = vadd.f32 %v95, %v96
    %v98 = vrot.slane %v97, 2
    %v99 = vadd.f32 %v97, %v98
    %v100 = vrot.slane %v99, 1
    %v101 = vadd.f32 %v99, %v100
    %s102 = vtos %v101
    %v103 = vmax.f32 %v72, 0.0
    %v104 = vand.u32 2147483647, %v72
    %v105 = vsub.f32 0.0, %v104
    %v106 = vmul.f32 %v105, 1.442695
    %v107 = vpow.pop %v106
    %v108 = vadd.f32 %v107, 1.0
    %v109 = vlog2.pop %v108
    %v110 = vmul.f32 %v109, 0.6931472
    %v111 = vadd.f32 %v103, %v110
    %v112 = vmul.f32 %v80, %v111
    %v113 = vsel %vm92, %v112, 0.0
    %114 = vadd.xlane.f32.xlu0 %v113
    %v115 = vpop.xlane.xlu0 %114
    %v116 = vrot.slane %v115, 4
    %v117 = vadd.f32 %v115, %v116
    %v118 = vrot.slane %v117, 2
    %v119 = vadd.f32 %v117, %v118
    %v120 = vrot.slane %v119, 1
    %v121 = vadd.f32 %v119, %v120
    %s122 = vtos %v121
    %v123 = vlaneseq
    %v124 = vand.u32 %v123, 127
    %vm125 = vcmp.eq.s32.totalorder %v75, 0
    %vm126 = vcmp.eq.s32.totalorder %v124, 0
    %vm127 = vmand %vm125, %vm126
    %v128 = vstv %s66
    %v129 = vsel %vm127, %v128, 0.0
    %vm130 = vcmp.eq.s32.totalorder %v124, 1
    %vm131 = vmand %vm125, %vm130
    %v132 = vstv %s102
    %v133 = vsel %vm131, %v132, 0.0
    %v134 = vadd.f32 %v129, %v133
    %vm135 = vcmp.eq.s32.totalorder %v124, 2
    %vm136 = vmand %vm125, %vm135
    %v137 = vstv %s122
    %v138 = vsel %vm136, %v137, 0.0
    %v139 = vadd.f32 %v134, %v138
    %140 = vst [vmem:[#allocation8] sm:$0xff] %v139
    // Predicated region
    $region26: #{tpu_custom_call.1} parent=1 // pred_check
      _
    $region27: #{tpu_custom_call.1} parent=1 // pred_check_branch
      %142 = sbr.rel (0) target = $region29
    $region28: #{tpu_custom_call.1} parent=1 // pred_region
      %s144 = ssub.s32 128, 128
      %145 = vsyncadd [#allocation4], %s144
      %s147 = sshll.u32 [#allocation8], 4
      %s148 = int_to_ptr.vmem [resolvable:$true] %s147
      %150 = dma.vmem_to_hbm [thread:$0]  %s148, 128, %s3, [#allocation4]
    $region29: #{tpu_custom_call.1} parent=1 // pred_fallthru
      _
    // Predicated region
    $region30: #{tpu_custom_call.1} parent=1 // pred_check
      _
    $region31: #{tpu_custom_call.1} parent=1 // pred_check_branch
      %152 = sbr.rel (0) target = $region33
    $region32: #{tpu_custom_call.1} parent=1 // pred_region
      %153 = dma.done [#allocation4], 128
    $region33: #{tpu_custom_call.1} parent=1 // pred_fallthru
      _
    %154 = vsyncpa [#allocation3], 1
    %155 = vsyncpa [#allocation6], 1
    %156 = vsyncpa [#allocation4], 1

</llo_original>
